<compile_context>
chip_gen: v7x
topology: tpu7x:2x2x1
jax: 0.10.0
libtpu: 0.0.40
codegen_flags: <defaults>
</compile_context>

<pallas_src>
import functools
import math

import jax
import jax.numpy as jnp
from jax.experimental import pallas as pl
from jax.experimental.pallas import tpu as pltpu

NEG_SLOPE = 0.01   # nn.LeakyReLU default negative_slope
BN_EPS = 1e-5      # nn.BatchNorm1d default eps
LANE = 128
SUB = 16           # bf16 sublane packing -> keep batch tiles multiples of 16


def _round_up(x, m):
    return ((x + m - 1) // m) * m


# ----------------------------------------------------------------------------
# Pallas kernel: whole network fused, one batch tile per grid step.
# refs = (x, W0, b0, ..., W_{L-1}, b_{L-1}, o).  Weights bf16 (VMEM-resident), biases f32.
# ----------------------------------------------------------------------------
def _fused_mlp_kernel(*refs, num_layers):
    x_ref = refs[0]
    o_ref = refs[-1]

    a = x_ref[...]                                               # bf16 (TB, F)
    for l in range(num_layers):
        w = refs[1 + 2 * l][...]                                 # bf16, resident
        b = refs[2 + 2 * l][...]                                 # f32 (1, N)
        y = jnp.dot(a, w, preferred_element_type=jnp.float32) + b   # MXU, f32 accumulation
        if l < num_layers - 1:
            y = jnp.maximum(y, NEG_SLOPE * y)                    # LeakyReLU in f32 (VPU)
            a = y.astype(jnp.bfloat16)                           # bf16 feed to next MXU op
        else:
            a = y                                                # output heads: no activation
    o_ref[...] = a                                               # lane-dense f32 store


@functools.partial(jax.jit, static_argnames=("num_events", "out_features", "block_batch"))
def cause_specific_forward(x, packed, num_events, out_features, block_batch=None):
    """Fused forward.  Returns (batch, num_events, out_features)."""
    weights = packed["weights"]          # list of bf16 (K, N)
    biases = packed["biases"]            # list of f32 (1, N)
    n_layers = len(weights)

    B, F = x.shape
    EO_pad = weights[-1].shape[1]
    EH_pad = weights[0].shape[1]

    weight_bytes = sum(int(w.size) * w.dtype.itemsize for w in weights) \
                 + sum(int(b.size) * b.dtype.itemsize for b in biases)

    # --- batch tile: as large as a conservative (v7x-safe) VMEM budget allows -------------
    if block_batch is None:
        TB = min(512, _round_up(max(B, 1), SUB))
        per_row = 2 * (2 * F + 4 * EO_pad) + 6 * EH_pad + 4 * EO_pad   # tiles (x2 buf) + acts
        budget = 40 * 1024 * 1024 - 2 * weight_bytes                   # stay under v7x 64 MiB
        while TB > SUB and TB * per_row > max(budget, 1 << 20):
            TB = _round_up(max(TB // 2, SUB), SUB)
    else:
        TB = _round_up(block_batch, SUB)
    B_pad = _round_up(B, TB)
    nb = B_pad // TB

    # batch-only padding; feature dim left unpadded (block last dim == full array dim)
    x_pad = jnp.zeros((B_pad, F), jnp.bfloat16).at[:B, :].set(x.astype(jnp.bfloat16))

    args = [x_pad]
    in_specs = [pl.BlockSpec((TB, F), lambda i: (i, 0))]
    for w, b in zip(weights, biases):
        args.append(w)
        in_specs.append(pl.BlockSpec(w.shape, lambda i: (0, 0)))   # resident across steps
        args.append(b)
        in_specs.append(pl.BlockSpec(b.shape, lambda i: (0, 0)))

    est = 2 * weight_bytes + 2 * TB * (2 * F + 4 * EO_pad) + TB * (6 * EH_pad + 4 * EO_pad)
    vmem_limit = int(min(max(2 * est, 16 << 20), 48 << 20))

    out = pl.pallas_call(
        functools.partial(_fused_mlp_kernel, num_layers=n_layers),
        out_shape=jax.ShapeDtypeStruct((B_pad, EO_pad), jnp.float32),
        grid=(nb,),
        in_specs=in_specs,
        out_specs=pl.BlockSpec((TB, EO_pad), lambda i: (i, 0)),
        compiler_params=pltpu.CompilerParams(
            dimension_semantics=("parallel",),       # megacore sharding on v7x; harmless elsewhere
            vmem_limit_bytes=vmem_limit),
    )(*args)

    return out[:B, :num_events * out_features].reshape(B, num_events, out_features)


# ----------------------------------------------------------------------------
# Parameter construction mirroring CauseSpecificNet.__init__ (deterministic, JAX RNG)
# ----------------------------------------------------------------------------
def build_params(key, in_features, intermediate_size, num_hidden_layers,
                 out_features, num_events):
    """Per-event raw params: hidden = [(W, b, bn_scale, bn_shift)], out = (W_out, b_out)."""
    events = []
    for _ in range(num_events):
        layers = []
        cur = in_features
        for _l in range(num_hidden_layers):
            key, kw, kb = jax.random.split(key, 3)
            # conservative_init: kaiming_normal_(relu, fan_in), *0.5 if multi-event, clamp.
            std = math.sqrt(2.0 / cur)
            w = std * jax.random.normal(kw, (cur, intermediate_size), jnp.float32)
            if num_events > 1:
                w = w * 0.5
            w = jnp.clip(w, -0.1, 0.1)
            bound = 1.0 / math.sqrt(cur)                       # PyTorch default bias init
            b = jax.random.uniform(kb, (intermediate_size,), jnp.float32, -bound, bound)
            # BatchNorm1d at init, eval mode: gamma=1, beta=0, mean=0, var=1.
            bn_scale = jnp.full((intermediate_size,), 1.0 / math.sqrt(1.0 + BN_EPS), jnp.float32)
            bn_shift = jnp.zeros((intermediate_size,), jnp.float32)
            layers.append((w, b, bn_scale, bn_shift))
            cur = intermediate_size

        key, kw, kb = jax.random.split(key, 3)
        if num_events > 1:
            # spec: zero output weight, bias = -1.0 for multi-event nets
            w_out = jnp.zeros((cur, out_features), jnp.float32)
            b_out = jnp.full((out_features,), -1.0, jnp.float32)
        else:
            bound = 1.0 / math.sqrt(cur)
            w_out = jax.random.uniform(kw, (cur, out_features), jnp.float32, -bound, bound)
            b_out = jax.random.uniform(kb, (out_features,), jnp.float32, -bound, bound)
        events.append({"hidden": layers, "out": (w_out, b_out)})
    return events


def fold_and_pack(events, in_features, intermediate_size, num_hidden_layers,
                  out_features, num_events):
    """Fold eval-mode BN forward into the following layer, then pack all events tightly
    into shared 128-lane groups (concat for layer 0, block-diagonal for deeper layers)."""
    H, O, E = intermediate_size, out_features, num_events
    EO_pad = _round_up(E * O, LANE)

    # ---- fold: h = BN(act(x@W+b)) followed by @W2 + b2  ==  act(x@W+b) @ (s*W2) + (t@W2+b2)
    folded = []                                    # per event: list of (W', b') per layer
    for ev in events:
        hw = ev["hidden"]
        fl = []
        if num_hidden_layers == 0:
            fl.append(ev["out"])
        else:
            fl.append((hw[0][0], hw[0][1]))
            prev_s, prev_t = hw[0][2], hw[0][3]
            for l in range(1, num_hidden_layers):
                w, b, s, t = hw[l]
                fl.append((prev_s[:, None] * w, prev_t @ w + b))
                prev_s, prev_t = s, t
            w_out, b_out = ev["out"]
            fl.append((prev_s[:, None] * w_out, prev_t @ w_out + b_out))
        folded.append(fl)

    weights, biases = [], []

    if num_hidden_layers == 0:
        # pure linear heads: one shared-input layer straight into the output slab
        W = jnp.zeros((in_features, EO_pad), jnp.float32)
        Bv = jnp.zeros((1, EO_pad), jnp.float32)
        for e in range(E):
            w, b = folded[e][0]
            W = W.at[:, e * O:(e + 1) * O].set(w)
            Bv = Bv.at[0, e * O:(e + 1) * O].set(b)
        weights.append(W)
        biases.append(Bv)
    else:
        EH_pad = _round_up(E * H, LANE)            # tight packing: events share lane groups

        # layer 0: all events share input x -> concat along output lanes
        W = jnp.zeros((in_features, EH_pad), jnp.float32)
        Bv = jnp.zeros((1, EH_pad), jnp.float32)
        for e in range(E):
            w, b = folded[e][0]
            W = W.at[:, e * H:(e + 1) * H].set(w)
            Bv = Bv.at[0, e * H:(e + 1) * H].set(b)
        weights.append(W)
        biases.append(Bv)

        # remaining hidden layers: block-diagonal inside the shared lane slab
        for l in range(1, num_hidden_layers):
            W = jnp.zeros((EH_pad, EH_pad), jnp.float32)
            Bv = jnp.zeros((1, EH_pad), jnp.float32)
            for e in range(E):
                w, b = folded[e][l]
                W = W.at[e * H:(e + 1) * H, e * H:(e + 1) * H].set(w)
                Bv = Bv.at[0, e * H:(e + 1) * H].set(b)
            weights.append(W)
            biases.append(Bv)

        # output heads: per-event blocks into one contiguous (.., E*O) lane-dense slab
        W = jnp.zeros((EH_pad, EO_pad), jnp.float32)
        Bv = jnp.zeros((1, EO_pad), jnp.float32)
        for e in range(E):
            w, b = folded[e][num_hidden_layers]
            W = W.at[e * H:(e + 1) * H, e * O:(e + 1) * O].set(w)
            Bv = Bv.at[0, e * O:(e + 1) * O].set(b)
        weights.append(W)
        biases.append(Bv)

    # bf16 weight storage (2x MXU throughput, half the VMEM/HBM); biases stay f32.
    weights = [w.astype(jnp.bfloat16) for w in weights]
    return {"weights": weights, "biases": biases}


# ----------------------------------------------------------------------------
# Pure-JAX reference (exact eval-mode module semantics, f32, unfolded) for checking
# ----------------------------------------------------------------------------
def reference_forward(events, x):
    outs = []
    for ev in events:
        a = x
        for (w, b, s, t) in ev["hidden"]:
            y = a @ w + b
            y = jnp.where(y >= 0.0, y, NEG_SLOPE * y)   # LeakyReLU
            a = y * s + t                               # eval-mode BatchNorm1d
        w_out, b_out = ev["out"]
        outs.append(a @ w_out + b_out)
    return jnp.stack(outs, axis=1)


if __name__ == "__main__":
    batch = 8
    in_features = 16
    intermediate_size = 32
    num_hidden_layers = 2
    out_features = 8

    # Tolerance reflects bf16 weight/activation storage (f32 accumulation) vs the f32 reference.
    TOL = dict(atol=3e-2, rtol=3e-2)

    key = jax.random.PRNGKey(0)
    kx, kp1, kp2, kp3, kw, kx2 = jax.random.split(key, 6)
    x = jax.random.normal(kx, (batch, in_features), jnp.float32)

    # ---- case 1: num_events = 2 (module spec: zero output weights, bias = -1) ----
    num_events = 2
    events2 = build_params(kp1, in_features, intermediate_size, num_hidden_layers,
                           out_features, num_events)
    packed2 = fold_and_pack(events2, in_features, intermediate_size, num_hidden_layers,
                            out_features, num_events)
    out2 = jax.block_until_ready(
        cause_specific_forward(x, packed2, num_events=num_events, out_features=out_features))
    ref2 = reference_forward(events2, x)
    assert out2.shape == (batch, num_events, out_features), out2.shape
    assert jnp.allclose(out2, ref2, **TOL), "mismatch (num_events=2)"

    # ---- case 2: same 2-event net but with random output heads (exercise tight block packing) ----
    events2b = []
    for ev in events2:
        kw, k1, k2 = jax.random.split(kw, 3)
        w_out = 0.05 * jax.random.normal(k1, (intermediate_size, out_features), jnp.float32)
        b_out = 0.05 * jax.random.normal(k2, (out_features,), jnp.float32)
        events2b.append({"hidden": ev["hidden"], "out": (w_out, b_out)})
    packed2b = fold_and_pack(events2b, in_features, intermediate_size, num_hidden_layers,
                             out_features, num_events)
    out2b = jax.block_until_ready(
        cause_specific_forward(x, packed2b, num_events=num_events, out_features=out_features))
    ref2b = reference_forward(events2b, x)
    assert jnp.allclose(out2b, ref2b, **TOL), "mismatch (num_events=2, random heads)"

    # ---- case 3: num_events = 1 (module returns unsqueezed single-net output) ----
    events1 = build_params(kp2, in_features, intermediate_size, num_hidden_layers,
                           out_features, 1)
    packed1 = fold_and_pack(events1, in_features, intermediate_size, num_hidden_layers,
                            out_features, 1)
    out1 = jax.block_until_ready(
        cause_specific_forward(x, packed1, num_events=1, out_features=out_features))
    ref1 = reference_forward(events1, x)
    assert out1.shape == (batch, 1, out_features), out1.shape
    assert jnp.allclose(out1, ref1, **TOL), "mismatch (num_events=1)"

    # ---- case 4: multi-step batch grid (pipelined tiles + padded final tile) ----
    x40 = jax.random.normal(kx2, (40, in_features), jnp.float32)
    out40 = jax.block_until_ready(
        cause_specific_forward(x40, packed2b, num_events=num_events,
                               out_features=out_features, block_batch=16))
    ref40 = reference_forward(events2b, x40)
    assert out40.shape == (40, num_events, out_features), out40.shape
    assert jnp.allclose(out40, ref40, **TOL), "mismatch (batch grid, 3 tiles)"

    # ---- case 5: num_hidden_layers = 0 (pure linear head) ----
    events0 = build_params(kp3, in_features, intermediate_size, 0, out_features, 1)
    packed0 = fold_and_pack(events0, in_features, intermediate_size, 0, out_features, 1)
    out0 = jax.block_until_ready(
        cause_specific_forward(x, packed0, num_events=1, out_features=out_features))
    ref0 = reference_forward(events0, x)
    assert out0.shape == (batch, 1, out_features), out0.shape
    assert jnp.allclose(out0, ref0, **TOL), "mismatch (num_hidden_layers=0)"

    print("KERNEL_OK")
</pallas_src>

<mosaic_0001>
module attributes {stable_mosaic.version = 11 : i64} {
  func.func @_fused_mlp_kernel(%arg0: i32, %arg1: memref<16x16xbf16, #tpu.memory_space<vmem>>, %arg2: memref<16x128xbf16, #tpu.memory_space<vmem>>, %arg3: memref<1x128xf32, #tpu.memory_space<vmem>>, %arg4: memref<128x128xbf16, #tpu.memory_space<vmem>>, %arg5: memref<1x128xf32, #tpu.memory_space<vmem>>, %arg6: memref<128x128xbf16, #tpu.memory_space<vmem>>, %arg7: memref<1x128xf32, #tpu.memory_space<vmem>>, %arg8: memref<16x128xf32, #tpu.memory_space<vmem>>) attributes {dimension_semantics = [#tpu.dimension_semantics<parallel>], iteration_bounds = array<i64: 1>, scalar_prefetch = 0 : i64, scratch_operands = 0 : i64, tpu.core_type = #tpu.core_type<tc>, window_params = [{transform_indices = @transform_0, window_bounds = array<i64: 16, 16>}, {pipeline_mode = #tpu.pipeline_mode<synchronous>, transform_indices = @transform_1, window_bounds = array<i64: 16, 128>}, {pipeline_mode = #tpu.pipeline_mode<synchronous>, transform_indices = @transform_2, window_bounds = array<i64: 1, 128>}, {pipeline_mode = #tpu.pipeline_mode<synchronous>, transform_indices = @transform_3, window_bounds = array<i64: 128, 128>}, {pipeline_mode = #tpu.pipeline_mode<synchronous>, transform_indices = @transform_4, window_bounds = array<i64: 1, 128>}, {pipeline_mode = #tpu.pipeline_mode<synchronous>, transform_indices = @transform_5, window_bounds = array<i64: 128, 128>}, {pipeline_mode = #tpu.pipeline_mode<synchronous>, transform_indices = @transform_6, window_bounds = array<i64: 1, 128>}, {transform_indices = @transform_7, window_bounds = array<i64: 16, 128>}]} {
    %c0 = arith.constant 0 : index
    %c0_0 = arith.constant 0 : index
    %0 = vector.load %arg1[%c0, %c0_0] : memref<16x16xbf16, #tpu.memory_space<vmem>>, vector<16x16xbf16>
    %c0_1 = arith.constant 0 : index
    %c0_2 = arith.constant 0 : index
    %1 = vector.load %arg2[%c0_1, %c0_2] : memref<16x128xbf16, #tpu.memory_space<vmem>>, vector<16x128xbf16>
    %c0_3 = arith.constant 0 : index
    %c0_4 = arith.constant 0 : index
    %2 = vector.load %arg3[%c0_3, %c0_4] : memref<1x128xf32, #tpu.memory_space<vmem>>, vector<1x128xf32>
    %cst = arith.constant dense<0.000000e+00> : vector<16x128xf32>
    %3 = tpu.matmul %0, %1, %cst {dimension_numbers = #tpu.dot_dimension_numbers<[1], [0], [0], [1], [0, 0, 1, 1], [], []>} : vector<16x16xbf16>, vector<16x128xbf16>, vector<16x128xf32> -> vector<16x128xf32>
    %4 = vector.broadcast %2 : vector<1x128xf32> to vector<16x128xf32>
    %5 = arith.addf %3, %4 : vector<16x128xf32>
    %cst_5 = arith.constant 0.00999999977 : f32
    %6 = vector.broadcast %cst_5 : f32 to vector<16x128xf32>
    %7 = arith.mulf %6, %5 : vector<16x128xf32>
    %8 = arith.maximumf %5, %7 : vector<16x128xf32>
    %9 = arith.truncf %8 : vector<16x128xf32> to vector<16x128xbf16>
    %c0_6 = arith.constant 0 : index
    %c0_7 = arith.constant 0 : index
    %10 = vector.load %arg4[%c0_6, %c0_7] : memref<128x128xbf16, #tpu.memory_space<vmem>>, vector<128x128xbf16>
    %c0_8 = arith.constant 0 : index
    %c0_9 = arith.constant 0 : index
    %11 = vector.load %arg5[%c0_8, %c0_9] : memref<1x128xf32, #tpu.memory_space<vmem>>, vector<1x128xf32>
    %cst_10 = arith.constant dense<0.000000e+00> : vector<16x128xf32>
    %12 = tpu.matmul %9, %10, %cst_10 {dimension_numbers = #tpu.dot_dimension_numbers<[1], [0], [0], [1], [0, 0, 1, 1], [], []>} : vector<16x128xbf16>, vector<128x128xbf16>, vector<16x128xf32> -> vector<16x128xf32>
    %13 = vector.broadcast %11 : vector<1x128xf32> to vector<16x128xf32>
    %14 = arith.addf %12, %13 : vector<16x128xf32>
    %cst_11 = arith.constant 0.00999999977 : f32
    %15 = vector.broadcast %cst_11 : f32 to vector<16x128xf32>
    %16 = arith.mulf %15, %14 : vector<16x128xf32>
    %17 = arith.maximumf %14, %16 : vector<16x128xf32>
    %18 = arith.truncf %17 : vector<16x128xf32> to vector<16x128xbf16>
    %c0_12 = arith.constant 0 : index
    %c0_13 = arith.constant 0 : index
    %19 = vector.load %arg6[%c0_12, %c0_13] : memref<128x128xbf16, #tpu.memory_space<vmem>>, vector<128x128xbf16>
    %c0_14 = arith.constant 0 : index
    %c0_15 = arith.constant 0 : index
    %20 = vector.load %arg7[%c0_14, %c0_15] : memref<1x128xf32, #tpu.memory_space<vmem>>, vector<1x128xf32>
    %cst_16 = arith.constant dense<0.000000e+00> : vector<16x128xf32>
    %21 = tpu.matmul %18, %19, %cst_16 {dimension_numbers = #tpu.dot_dimension_numbers<[1], [0], [0], [1], [0, 0, 1, 1], [], []>} : vector<16x128xbf16>, vector<128x128xbf16>, vector<16x128xf32> -> vector<16x128xf32>
    %22 = vector.broadcast %20 : vector<1x128xf32> to vector<16x128xf32>
    %23 = arith.addf %21, %22 : vector<16x128xf32>
    %c0_17 = arith.constant 0 : index
    %c0_18 = arith.constant 0 : index
    %24 = vector.load %arg8[%c0_17, %c0_18] : memref<16x128xf32, #tpu.memory_space<vmem>>, vector<16x128xf32>
    tpu.vector_store %arg8[%c0_17, %c0_18], %23 {strides = array<i32>} : memref<16x128xf32, #tpu.memory_space<vmem>>, vector<16x128xf32>,
    return
  }
  func.func @transform_0(%arg0: i32) -> (i32, i32) {
    %c0_i32 = arith.constant 0 : i32
    %c0_i32_0 = arith.constant 0 : i32
    return %arg0, %c0_i32 : i32, i32
  }
  func.func @transform_1(%arg0: i32) -> (i32, i32) {
    %c0_i32 = arith.constant 0 : i32
    %c0_i32_0 = arith.constant 0 : i32
    %c0_i32_1 = arith.constant 0 : i32
    return %c0_i32, %c0_i32_0 : i32, i32
  }
  func.func @transform_2(%arg0: i32) -> (i32, i32) {
    %c0_i32 = arith.constant 0 : i32
    %c0_i32_0 = arith.constant 0 : i32
    %c0_i32_1 = arith.constant 0 : i32
    return %c0_i32, %c0_i32_0 : i32, i32
  }
  func.func @transform_3(%arg0: i32) -> (i32, i32) {
    %c0_i32 = arith.constant 0 : i32
    %c0_i32_0 = arith.constant 0 : i32
    %c0_i32_1 = arith.constant 0 : i32
    return %c0_i32, %c0_i32_0 : i32, i32
  }
  func.func @transform_4(%arg0: i32) -> (i32, i32) {
    %c0_i32 = arith.constant 0 : i32
    %c0_i32_0 = arith.constant 0 : i32
    %c0_i32_1 = arith.constant 0 : i32
    return %c0_i32, %c0_i32_0 : i32, i32
  }
  func.func @transform_5(%arg0: i32) -> (i32, i32) {
    %c0_i32 = arith.constant 0 : i32
    %c0_i32_0 = arith.constant 0 : i32
    %c0_i32_1 = arith.constant 0 : i32
    return %c0_i32, %c0_i32_0 : i32, i32
  }
  func.func @transform_6(%arg0: i32) -> (i32, i32) {
    %c0_i32 = arith.constant 0 : i32
    %c0_i32_0 = arith.constant 0 : i32
    %c0_i32_1 = arith.constant 0 : i32
    return %c0_i32, %c0_i32_0 : i32, i32
  }
  func.func @transform_7(%arg0: i32) -> (i32, i32) {
    %c0_i32 = arith.constant 0 : i32
    %c0_i32_0 = arith.constant 0 : i32
    return %arg0, %c0_i32 : i32, i32
  }
}

</mosaic_0001>

<llo_original>
// kernel: cause_specific_forward.1
$region0: #{cause_specific_forward.1}
  #allocation0 [shape = 'u32[]', space=smem, size = 0x4, offset = 0x4, fixed_abs, tag = 'smem constant byte address 0x4 - core index']
  #allocation1 [shape = 'u32[144,128]{1,0:T(1,128)}', space=vmem, size = 0x12000, scoped, tag = 'internal scratch']
  %s0 = inlined_call_operand.vmem [shape: bf16[16,16], index: 0, kind: input, shape index: {}]
  %s1 = inlined_call_operand.vmem [shape: bf16[16,128], index: 1, kind: input, shape index: {}]
  %s2 = inlined_call_operand.vmem [shape: f32[1,128], index: 2, kind: input, shape index: {}]
  %s3 = inlined_call_operand.hbm [shape: bf16[128,128], index: 3, kind: input, shape index: {}]
  %s4 = inlined_call_operand.vmem [shape: f32[1,128], index: 4, kind: input, shape index: {}]
  %s5 = inlined_call_operand.hbm [shape: bf16[128,128], index: 5, kind: input, shape index: {}]
  %s6 = inlined_call_operand.vmem [shape: f32[1,128], index: 6, kind: input, shape index: {}]
  %s7 = inlined_call_operand.vmem [shape: f32[16,128], index: 7, kind: output, shape index: {}]
  %s8 = sld [smem:[#allocation0]]
  $region46: #{cause_specific_forward.1} parent=0
    _
  %s10 = ssub.s32 1, %s8
  %s11 = scalar_select 0, %s10, %s8
  $region1: #{cause_specific_forward.1} parent=0
    #allocation2 [shape = 'u8[32768]{0}', space=vmem, size = 0x8000, scoped, tag = 'input window, operand 3, single buffered']
    #allocation3 [shape = 's32[1]{0}', space=sflag, size = 0x4, scoped, tag = 'scoped memory for cause_specific_forward.1']
    #allocation4 [shape = 'u8[32768]{0}', space=vmem, size = 0x8000, scoped, tag = 'input window, operand 5, single buffered']
    #allocation5 [shape = 's32[1]{0}', space=sflag, size = 0x4, scoped, tag = 'scoped memory for cause_specific_forward.1']
    %12 = vsyncpa [#allocation3], 0
    %13 = vsyncpa [#allocation5], 0
    // Predicated region
    $region2: #{cause_specific_forward.1} parent=1 // pred_check
      _
    $region3: #{cause_specific_forward.1} parent=1 // pred_check_branch
      %15 = sbr.rel (0) target = $region5
    $region4: #{cause_specific_forward.1} parent=1 // pred_region
      _
    $region5: #{cause_specific_forward.1} parent=1 // pred_fallthru
      _
    // Predicated region
    $region6: #{cause_specific_forward.1} parent=1 // pred_check
      _
    $region7: #{cause_specific_forward.1} parent=1 // pred_check_branch
      %17 = sbr.rel (0) target = $region9
    $region8: #{cause_specific_forward.1} parent=1 // pred_region
      _
    $region9: #{cause_specific_forward.1} parent=1 // pred_fallthru
      _
    // Predicated region
    $region10: #{cause_specific_forward.1} parent=1 // pred_check
      _
    $region11: #{cause_specific_forward.1} parent=1 // pred_check_branch
      %19 = sbr.rel (0) target = $region13
    $region12: #{cause_specific_forward.1} parent=1 // pred_region
      _
    $region13: #{cause_specific_forward.1} parent=1 // pred_fallthru
      _
    // Predicated region
    $region14: #{cause_specific_forward.1} parent=1 // pred_check
      _
    $region15: #{cause_specific_forward.1} parent=1 // pred_check_branch
      %21 = sbr.rel (0) target = $region17
    $region16: #{cause_specific_forward.1} parent=1 // pred_region
      %s23 = ssub.s32 1024, 1024
      %24 = vsyncadd [#allocation3], %s23
      %s25 = sshll.u32 [#allocation2], 4
      %s26 = int_to_ptr.vmem [resolvable:$true] %s25
      %31 = dma.hbm_to_vmem [thread:$0]  %s3, 1024, %s26, [#allocation3], 64, 64, 4
    $region17: #{cause_specific_forward.1} parent=1 // pred_fallthru
      _
    // Predicated region
    $region18: #{cause_specific_forward.1} parent=1 // pred_check
      _
    $region19: #{cause_specific_forward.1} parent=1 // pred_check_branch
      %33 = sbr.rel (0) target = $region21
    $region20: #{cause_specific_forward.1} parent=1 // pred_region
      _
    $region21: #{cause_specific_forward.1} parent=1 // pred_fallthru
      _
    // Predicated region
    $region22: #{cause_specific_forward.1} parent=1 // pred_check
      _
    $region23: #{cause_specific_forward.1} parent=1 // pred_check_branch
      %35 = sbr.rel (0) target = $region25
    $region24: #{cause_specific_forward.1} parent=1 // pred_region
      %s37 = ssub.s32 1024, 1024
      %38 = vsyncadd [#allocation5], %s37
      %s39 = sshll.u32 [#allocation4], 4
      %s40 = int_to_ptr.vmem [resolvable:$true] %s39
      %45 = dma.hbm_to_vmem [thread:$0]  %s5, 1024, %s40, [#allocation5], 64, 64, 4
    $region25: #{cause_specific_forward.1} parent=1 // pred_fallthru
      _
    // Predicated region
    $region26: #{cause_specific_forward.1} parent=1 // pred_check
      _
    $region27: #{cause_specific_forward.1} parent=1 // pred_check_branch
      %47 = sbr.rel (0) target = $region29
    $region28: #{cause_specific_forward.1} parent=1 // pred_region
      _
    $region29: #{cause_specific_forward.1} parent=1 // pred_fallthru
      _
    // Predicated region
    $region30: #{cause_specific_forward.1} parent=1 // pred_check
      _
    $region31: #{cause_specific_forward.1} parent=1 // pred_check_branch
      %49 = sbr.rel (0) target = $region33
    $region32: #{cause_specific_forward.1} parent=1 // pred_region
      %50 = dma.done [#allocation3], 1024
    $region33: #{cause_specific_forward.1} parent=1 // pred_fallthru
      _
    // Predicated region
    $region34: #{cause_specific_forward.1} parent=1 // pred_check
      _
    $region35: #{cause_specific_forward.1} parent=1 // pred_check_branch
      %52 = sbr.rel (0) target = $region37
    $region36: #{cause_specific_forward.1} parent=1 // pred_region
      %53 = dma.done [#allocation5], 1024
    $region37: #{cause_specific_forward.1} parent=1 // pred_fallthru
      _
    %v55 = vld [vmem:[%s0] sm:$0xf]
    %v56 = vld [vmem:[%s0 + $0x4] sm:$0xf]
    %v57 = vld [vmem:[%s1] sm:$0xf]
    %v58 = vld [vmem:[%s1 + $0x4] sm:$0xf]
    %v59 = vld [vmem:[%s2] sm:$0x1]
    %v61 = vlaneseq
    %v62 = vshrl.u32 %v61, 7
    %v63 = vsub.s32 0, %v62
    %v64 = vrot.slane %v59, %v63
    %v68 = vunpack.c.l.b16 %v55
    %v69 = vunpack.c.l.b16 %v56
    %v70 = vpack.c.b16 %v69, %v68
    %v73 = vunpack.c.l.b16 %v57
    %v74 = vunpack.c.l.b16 %v58
    %v75 = vpack.c.b16 %v74, %v73
    %vm77 = vcmask 130048
    %v79 = vsel %vm77, %v70, 0
    %81 = vmatprep.subr.bf16.mxu0 0
    %82 = vmatpush1.bf16.msra.mxu0 %v75
    %83 = vmatprep.subr.bf16.mxu0 0
    %84 = vmatpush1.bf16.msra.mxu0 0
    %85 = vmatprep.subr.bf16.mxu0 0
    %86 = vmatpush1.bf16.msra.mxu0 0
    %87 = vmatprep.subr.bf16.mxu0 0
    %88 = vmatpush1.bf16.msra.mxu0 0
    %89 = vmatprep.subr.bf16.mxu0 0
    %90 = vmatpush1.bf16.msra.mxu0 0
    %91 = vmatprep.subr.bf16.mxu0 0
    %92 = vmatpush1.bf16.msra.mxu0 0
    %93 = vmatprep.subr.bf16.mxu0 0
    %94 = vmatpush1.bf16.msra.mxu0 0
    %95 = vmatprep.subr.bf16.mxu0 0
    %96 = vmatpush1.bf16.msra.mxu0 0
    %97 = vmatprep.subr.bf16.mxu0 0
    %98 = vmatpush1.bf16.msra.mxu0 0
    %99 = vmatprep.subr.bf16.mxu0 0
    %100 = vmatpush1.bf16.msra.mxu0 0
    %101 = vmatprep.subr.bf16.mxu0 0
    %102 = vmatpush1.bf16.msra.mxu0 0
    %103 = vmatprep.subr.bf16.mxu0 0
    %104 = vmatpush1.bf16.msra.mxu0 0
    %105 = vmatprep.subr.bf16.mxu0 0
    %106 = vmatpush1.bf16.msra.mxu0 0
    %107 = vmatprep.subr.bf16.mxu0 0
    %108 = vmatpush1.bf16.msra.mxu0 0
    %109 = vmatprep.subr.bf16.mxu0 0
    %110 = vmatpush1.bf16.msra.mxu0 0
    %111 = vmatprep.subr.bf16.mxu0 0
    %112 = vmatpush1.bf16.msra.mxu0 0
    %113 = vmatprep.mubr.bf16.mxu0 0
    %114 = vmatmul.mubr.bf16.gmra.mrb[0].mxu0 %v79
    %v115 = vpop.f32.mrb[0].mxu0
    %v116 = vadd.f32 %v64, %v115
    %v117 = vpop.f32.mrb[0].mxu0
    %v118 = vpop.f32.mrb[0].mxu0
    %v119 = vadd.f32 %v64, %v118
    %v120 = vpop.f32.mrb[0].mxu0
    %121 = vdwg.mxu0
    %v122 = vmul.f32 %v116, 0.01
    %v123 = vmul.f32 %v119, 0.01
    %v124 = vmax.f32 %v116, %v122
    %v125 = vmax.f32 %v119, %v123
    %v126 = vpack.c.bf16 %v125, %v124
    %v127 = vld [vmem:[#allocation2] sm:$0xf]
    %v128 = vld [vmem:[#allocation2 + $0x4] sm:$0xf]
    %v129 = vld [vmem:[#allocation2 + $0x8] sm:$0xf]
    %v130 = vld [vmem:[#allocation2 + $0xc] sm:$0xf]
    %v131 = vld [vmem:[#allocation2 + $0x10] sm:$0xf]
    %v132 = vld [vmem:[#allocation2 + $0x14] sm:$0xf]
    %v133 = vld [vmem:[#allocation2 + $0x18] sm:$0xf]
    %v134 = vld [vmem:[#allocation2 + $0x1c] sm:$0xf]
    %v135 = vld [vmem:[#allocation2 + $0x20] sm:$0xf]
    %v136 = vld [vmem:[#allocation2 + $0x24] sm:$0xf]
    %v137 = vld [vmem:[#allocation2 + $0x28] sm:$0xf]
    %v138 = vld [vmem:[#allocation2 + $0x2c] sm:$0xf]
    %v139 = vld [vmem:[#allocation2 + $0x30] sm:$0xf]
    %v140 = vld [vmem:[#allocation2 + $0x34] sm:$0xf]
    %v141 = vld [vmem:[#allocation2 + $0x38] sm:$0xf]
    %v142 = vld [vmem:[#allocation2 + $0x3c] sm:$0xf]
    %v143 = vld [vmem:[%s4] sm:$0x1]
    %v145 = vlaneseq
    %v146 = vshrl.u32 %v145, 7
    %v147 = vsub.s32 0, %v146
    %v148 = vrot.slane %v143, %v147
    %v166 = vunpack.c.l.b16 %v127
    %v167 = vunpack.c.l.b16 %v128
    %v168 = vunpack.c.l.b16 %v129
    %v169 = vunpack.c.l.b16 %v130
    %v170 = vunpack.c.l.b16 %v131
    %v171 = vunpack.c.l.b16 %v132
    %v172 = vunpack.c.l.b16 %v133
    %v173 = vunpack.c.l.b16 %v134
    %v174 = vunpack.c.l.b16 %v135
    %v175 = vunpack.c.l.b16 %v136
    %v176 = vunpack.c.l.b16 %v137
    %v177 = vunpack.c.l.b16 %v138
    %v178 = vunpack.c.l.b16 %v139
    %v179 = vunpack.c.l.b16 %v140
    %v180 = vunpack.c.l.b16 %v141
    %v181 = vunpack.c.l.b16 %v142
    %v182 = vpack.c.b16 %v167, %v166
    %v183 = vpack.c.b16 %v169, %v168
    %v184 = vpack.c.b16 %v171, %v170
    %v185 = vpack.c.b16 %v173, %v172
    %v186 = vpack.c.b16 %v175, %v174
    %v187 = vpack.c.b16 %v177, %v176
    %v188 = vpack.c.b16 %v179, %v178
    %v189 = vpack.c.b16 %v181, %v180
    %198 = vmatprep.subr.bf16.mxu0 0
    %199 = vmatpush1.bf16.msra.mxu0 %v182
    %200 = vmatprep.subr.bf16.mxu0 0
    %201 = vmatpush1.bf16.msra.mxu0 %v183
    %202 = vmatprep.subr.bf16.mxu0 0
    %203 = vmatpush1.bf16.msra.mxu0 %v184
    %204 = vmatprep.subr.bf16.mxu0 0
    %205 = vmatpush1.bf16.msra.mxu0 %v185
    %206 = vmatprep.subr.bf16.mxu0 0
    %207 = vmatpush1.bf16.msra.mxu0 %v186
    %208 = vmatprep.subr.bf16.mxu0 0
    %209 = vmatpush1.bf16.msra.mxu0 %v187
    %210 = vmatprep.subr.bf16.mxu0 0
    %211 = vmatpush1.bf16.msra.mxu0 %v188
    %212 = vmatprep.subr.bf16.mxu0 0
    %213 = vmatpush1.bf16.msra.mxu0 %v189
    %214 = vmatprep.subr.bf16.mxu0 0
    %215 = vmatpush1.bf16.msra.mxu0 0
    %216 = vmatprep.subr.bf16.mxu0 0
    %217 = vmatpush1.bf16.msra.mxu0 0
    %218 = vmatprep.subr.bf16.mxu0 0
    %219 = vmatpush1.bf16.msra.mxu0 0
    %220 = vmatprep.subr.bf16.mxu0 0
    %221 = vmatpush1.bf16.msra.mxu0 0
    %222 = vmatprep.subr.bf16.mxu0 0
    %223 = vmatpush1.bf16.msra.mxu0 0
    %224 = vmatprep.subr.bf16.mxu0 0
    %225 = vmatpush1.bf16.msra.mxu0 0
    %226 = vmatprep.subr.bf16.mxu0 0
    %227 = vmatpush1.bf16.msra.mxu0 0
    %228 = vmatprep.subr.bf16.mxu0 0
    %229 = vmatpush1.bf16.msra.mxu0 0
    %230 = vmatprep.mubr.bf16.mxu0 0
    %231 = vmatmul.mubr.bf16.gmra.mrb[0].mxu0 %v126
    %v232 = vpop.f32.mrb[0].mxu0
    %v233 = vadd.f32 %v148, %v232
    %v234 = vpop.f32.mrb[0].mxu0
    %v235 = vpop.f32.mrb[0].mxu0
    %v236 = vadd.f32 %v148, %v235
    %v237 = vpop.f32.mrb[0].mxu0
    %238 = vdwg.mxu0
    %v239 = vmul.f32 %v233, 0.01
    %v240 = vmul.f32 %v236, 0.01
    %v241 = vmax.f32 %v233, %v239
    %v242 = vmax.f32 %v236, %v240
    %v243 = vpack.c.bf16 %v242, %v241
    %v244 = vld [vmem:[#allocation4] sm:$0xf]
    %v245 = vld [vmem:[#allocation4 + $0x4] sm:$0xf]
    %v246 = vld [vmem:[#allocation4 + $0x8] sm:$0xf]
    %v247 = vld [vmem:[#allocation4 + $0xc] sm:$0xf]
    %v248 = vld [vmem:[#allocation4 + $0x10] sm:$0xf]
    %v249 = vld [vmem:[#allocation4 + $0x14] sm:$0xf]
    %v250 = vld [vmem:[#allocation4 + $0x18] sm:$0xf]
    %v251 = vld [vmem:[#allocation4 + $0x1c] sm:$0xf]
    %v252 = vld [vmem:[#allocation4 + $0x20] sm:$0xf]
    %v253 = vld [vmem:[#allocation4 + $0x24] sm:$0xf]
    %v254 = vld [vmem:[#allocation4 + $0x28] sm:$0xf]
    %v255 = vld [vmem:[#allocation4 + $0x2c] sm:$0xf]
    %v256 = vld [vmem:[#allocation4 + $0x30] sm:$0xf]
    %v257 = vld [vmem:[#allocation4 + $0x34] sm:$0xf]
    %v258 = vld [vmem:[#allocation4 + $0x38] sm:$0xf]
    %v259 = vld [vmem:[#allocation4 + $0x3c] sm:$0xf]
    %v260 = vld [vmem:[%s6] sm:$0x1]
    %v262 = vlaneseq
    %v263 = vshrl.u32 %v262, 7
    %v264 = vsub.s32 0, %v263
    %v265 = vrot.slane %v260, %v264
    %v283 = vunpack.c.l.b16 %v244
    %v284 = vunpack.c.l.b16 %v245
    %v285 = vunpack.c.l.b16 %v246
    %v286 = vunpack.c.l.b16 %v247
    %v287 = vunpack.c.l.b16 %v248
    %v288 = vunpack.c.l.b16 %v249
    %v289 = vunpack.c.l.b16 %v250
    %v290 = vunpack.c.l.b16 %v251
    %v291 = vunpack.c.l.b16 %v252
    %v292 = vunpack.c.l.b16 %v253
    %v293 = vunpack.c.l.b16 %v254
    %v294 = vunpack.c.l.b16 %v255
    %v295 = vunpack.c.l.b16 %v256
    %v296 = vunpack.c.l.b16 %v257
    %v297 = vunpack.c.l.b16 %v258
    %v298 = vunpack.c.l.b16 %v259
    %v299 = vpack.c.b16 %v284, %v283
    %v300 = vpack.c.b16 %v286, %v285
    %v301 = vpack.c.b16 %v288, %v287
    %v302 = vpack.c.b16 %v290, %v289
    %v303 = vpack.c.b16 %v292, %v291
    %v304 = vpack.c.b16 %v294, %v293
    %v305 = vpack.c.b16 %v296, %v295
    %v306 = vpack.c.b16 %v298, %v297
    %315 = vmatprep.subr.bf16.mxu0 0
    %316 = vmatpush1.bf16.msra.mxu0 %v299
    %317 = vmatprep.subr.bf16.mxu0 0
    %318 = vmatpush1.bf16.msra.mxu0 %v300
    %319 = vmatprep.subr.bf16.mxu0 0
    %320 = vmatpush1.bf16.msra.mxu0 %v301
    %321 = vmatprep.subr.bf16.mxu0 0
    %322 = vmatpush1.bf16.msra.mxu0 %v302
    %323 = vmatprep.subr.bf16.mxu0 0
    %324 = vmatpush1.bf16.msra.mxu0 %v303
    %325 = vmatprep.subr.bf16.mxu0 0
    %326 = vmatpush1.bf16.msra.mxu0 %v304
    %327 = vmatprep.subr.bf16.mxu0 0
    %328 = vmatpush1.bf16.msra.mxu0 %v305
    %329 = vmatprep.subr.bf16.mxu0 0
    %330 = vmatpush1.bf16.msra.mxu0 %v306
    %331 = vmatprep.subr.bf16.mxu0 0
    %332 = vmatpush1.bf16.msra.mxu0 0
    %333 = vmatprep.subr.bf16.mxu0 0
    %334 = vmatpush1.bf16.msra.mxu0 0
    %335 = vmatprep.subr.bf16.mxu0 0
    %336 = vmatpush1.bf16.msra.mxu0 0
    %337 = vmatprep.subr.bf16.mxu0 0
    %338 = vmatpush1.bf16.msra.mxu0 0
    %339 = vmatprep.subr.bf16.mxu0 0
    %340 = vmatpush1.bf16.msra.mxu0 0
    %341 = vmatprep.subr.bf16.mxu0 0
    %342 = vmatpush1.bf16.msra.mxu0 0
    %343 = vmatprep.subr.bf16.mxu0 0
    %344 = vmatpush1.bf16.msra.mxu0 0
    %345 = vmatprep.subr.bf16.mxu0 0
    %346 = vmatpush1.bf16.msra.mxu0 0
    %347 = vmatprep.mubr.bf16.mxu0 0
    %348 = vmatmul.mubr.bf16.gmra.mrb[0].mxu0 %v243
    %v349 = vpop.f32.mrb[0].mxu0
    %v350 = vadd.f32 %v265, %v349
    %v351 = vpop.f32.mrb[0].mxu0
    %v352 = vpop.f32.mrb[0].mxu0
    %v353 = vadd.f32 %v265, %v352
    %v354 = vpop.f32.mrb[0].mxu0
    %355 = vdwg.mxu0
    %356 = vst [vmem:[%s7] sm:$0xff] %v350
    %357 = vst [vmem:[%s7 + $0x8] sm:$0xff] %v353
    // Predicated region
    $region38: #{cause_specific_forward.1} parent=1 // pred_check
      _
    $region39: #{cause_specific_forward.1} parent=1 // pred_check_branch
      %359 = sbr.rel (0) target = $region41
    $region40: #{cause_specific_forward.1} parent=1 // pred_region
      _
    $region41: #{cause_specific_forward.1} parent=1 // pred_fallthru
      _
    // Predicated region
    $region42: #{cause_specific_forward.1} parent=1 // pred_check
      _
    $region43: #{cause_specific_forward.1} parent=1 // pred_check_branch
      %361 = sbr.rel (0) target = $region45
    $region44: #{cause_specific_forward.1} parent=1 // pred_region
      _
    $region45: #{cause_specific_forward.1} parent=1 // pred_fallthru
      _
    %362 = vsyncpa [#allocation3], 1
    %363 = vsyncpa [#allocation5], 1

</llo_original>
